<compile_context>
chip_gen: v7x
topology: tpu7x:2x2x1
jax: 0.10.0
libtpu: 0.0.40
codegen_flags: <defaults>
</compile_context>

<pallas_src>
import functools
import math

import jax
import jax.numpy as jnp
from jax import lax
from jax.experimental import pallas as pl
from jax.experimental.pallas import tpu as pltpu

_LANES = 128
_SUBLANES = 8


def _cdiv(a, b):
    return -(-a // b)


def _round_up(a, b):
    return _cdiv(a, b) * b


def _fused_reference(image_A, image_B, image_fused):
    """Fused max/abs/mean in plain JAX (used for ragged / tiny inputs and tests)."""
    joint = jnp.maximum(image_A, image_B)
    return jnp.mean(jnp.abs(image_fused - joint), dtype=jnp.float32)


def _detect_num_tensorcores():
    """Best-effort count of TensorCores addressable by one pallas_call (1 or 2)."""
    try:
        dev = jax.devices()[0]
        if getattr(dev, "platform", "") != "tpu":
            return 1
        kind = str(getattr(dev, "device_kind", "")).lower()
        # v4 / v5p (megacore) and v7x expose two TensorCores behind one device;
        # v5e / v6e have a single TC; v2/v3 cores show up as separate devices.
        if ("v4" in kind) or ("v5p" in kind) or ("v5 p" in kind) or ("7" in kind):
            return 2
    except Exception:
        pass
    return 1


def _l_intensity_kernel(a_ref, b_ref, f_ref, out_ref, acc_ref, *, valid_rows):
    c = pl.program_id(0)           # split ("parallel") axis
    i = pl.program_id(1)           # reduction ("arbitrary") axis
    steps = pl.num_programs(1)
    tile_rows = a_ref.shape[0]     # static

    @pl.when(i == 0)
    def _():
        acc_ref[...] = jnp.zeros_like(acc_ref)

    # Elementwise work stays in the input dtype (bf16 VPU on v6e/v7x).
    diff = jnp.abs(f_ref[...] - jnp.maximum(a_ref[...], b_ref[...]))

    # Rows of this block that are real data (valid_rows is static; offset traced).
    remaining = valid_rows - (c * steps + i) * tile_rows

    def _accumulate(d):
        # VPU-only partial reduce: each (8,128) f32 slab is one vreg, so the
        # axis-0 sum is plain vreg-wise adds (no XLU, no masked scalar stores).
        part = d.astype(jnp.float32).reshape(
            tile_rows // _SUBLANES, _SUBLANES, _LANES)
        acc_ref[...] += jnp.sum(part, axis=0)

    @pl.when(remaining >= tile_rows)           # fast path: full block
    def _():
        _accumulate(diff)

    @pl.when(remaining < tile_rows)            # boundary (or empty) block: mask rows
    def _():
        row_ids = lax.broadcasted_iota(jnp.int32, (tile_rows, _LANES), 0)
        _accumulate(jnp.where(row_ids < remaining, diff, jnp.zeros_like(diff)))

    @pl.when(i == steps - 1)
    def _():
        # Dump the per-split accumulator into a lane-dense (1, 8, 128) block;
        # the final cross-lane reduce happens in the wrapper.
        out_ref[0] = acc_ref[...]


def l_intensity_loss(image_A, image_B, image_fused, *,
                     num_splits=None,
                     target_tile_bytes=2 * 1024 * 1024,
                     min_pallas_elements=1 << 20):
    """Pallas implementation of L_Intensity. Inputs: same-shape arrays (e.g. NCHW)."""
    assert image_A.shape == image_B.shape == image_fused.shape
    total = math.prod(image_A.shape)

    # Note: mixed-dtype inputs are promoted via jnp.result_type (e.g. bf16+f32->f32),
    # matching standard JAX promotion; this changes HBM traffic for mixed inputs.
    dtype = jnp.result_type(image_A.dtype, image_B.dtype, image_fused.dtype)

    # Pure-JAX fused path: ragged totals (not a multiple of 128) would need a
    # full pad/slice copy of all three inputs before the kernel, which already
    # costs as much HBM traffic as XLA's fused max/abs/mean; tiny totals are
    # dominated by pallas_call launch overhead.
    if (total % _LANES != 0
            or total < _LANES * _SUBLANES
            or total < min_pallas_elements):
        return _fused_reference(image_A, image_B, image_fused)

    if num_splits is None:
        num_splits = _detect_num_tensorcores()
    num_splits = max(1, int(num_splits))

    M = total // _LANES
    itemsize = jnp.dtype(dtype).itemsize

    # --- Rebalanced row tiling (covers M almost exactly; never pads data). ---
    target_rows = max(
        _SUBLANES,
        _round_up(max(1, target_tile_bytes // (_LANES * itemsize)), _SUBLANES))
    nblocks_t = max(num_splits, _cdiv(M, target_rows))
    tile_rows = _round_up(_cdiv(M, _round_up(nblocks_t, num_splits)), _SUBLANES)
    if tile_rows > M:  # never let a block be taller than the array
        tile_rows = max(_SUBLANES, (M // _SUBLANES) * _SUBLANES)
    nblocks_valid = _cdiv(M, tile_rows)          # blocks that contain real rows
    nblocks = _round_up(nblocks_valid, num_splits)
    steps = nblocks // num_splits
    last_block = nblocks_valid - 1

    def _prep(x):
        if x.dtype != dtype:
            x = x.astype(dtype)
        return x.reshape(M, _LANES)              # row-major bitcast, no copy

    a2 = _prep(image_A)
    b2 = _prep(image_B)
    f2 = _prep(image_fused)

    def in_map(c, i):
        # Clamp so no block's DMA starts past the end of the array; the kernel
        # masks any rows (or whole re-read blocks) beyond `valid_rows`.
        return (jnp.minimum(c * steps + i, last_block), 0)

    in_spec = pl.BlockSpec((tile_rows, _LANES), in_map)
    out_spec = pl.BlockSpec((1, _SUBLANES, _LANES), lambda c, i: (c, 0, 0))

    partials = pl.pallas_call(
        functools.partial(_l_intensity_kernel, valid_rows=M),
        out_shape=jax.ShapeDtypeStruct((num_splits, _SUBLANES, _LANES),
                                       jnp.float32),
        grid_spec=pltpu.PrefetchScalarGridSpec(
            num_scalar_prefetch=0,
            grid=(num_splits, steps),
            in_specs=[in_spec, in_spec, in_spec],
            out_specs=out_spec,
            scratch_shapes=[pltpu.VMEM((_SUBLANES, _LANES), jnp.float32)],
        ),
        compiler_params=pltpu.CompilerParams(
            # Leading split axis shards across multi-TC parts (v4/v5p/v7x);
            # inner axis is the reduction (output block resident across it).
            dimension_semantics=("parallel", "arbitrary"),
            vmem_limit_bytes=32 * 1024 * 1024,
        ),
    )(a2, b2, f2)

    return jnp.sum(partials) / jnp.float32(total)


if __name__ == "__main__":
    key = jax.random.PRNGKey(0)
    kA, kB, kF = jax.random.split(key, 3)

    def make(shape, dtype=jnp.float32):
        return (jax.random.uniform(kA, shape, dtype=dtype),
                jax.random.uniform(kB, shape, dtype=dtype),
                jax.random.uniform(kF, shape, dtype=dtype))

    def check(out, ref):
        assert jnp.allclose(out, ref, rtol=1e-5, atol=1e-6), (out, ref)

    # 1) Small NCHW shape implied by the module; force the kernel path.
    a, b, f = make((2, 4, 16, 16))
    out = jax.block_until_ready(l_intensity_loss(a, b, f, min_pallas_elements=0))
    check(out, _fused_reference(a, b, f))

    # 2) Multi-step grid with a masked partial last block (M = 121 rows).
    a, b, f = make((11, 11, 128))
    out = jax.block_until_ready(
        l_intensity_loss(a, b, f, min_pallas_elements=0,
                         target_tile_bytes=_SUBLANES * _LANES * 4))
    check(out, _fused_reference(a, b, f))

    # 3) Larger 128-divisible shape: default tiling, exact coverage, no padding.
    a, b, f = make((8, 3, 224, 224))
    out = jax.block_until_ready(l_intensity_loss(a, b, f))
    check(out, _fused_reference(a, b, f))

    # 4) Ragged total (not a multiple of 128): fused pure-JAX path, no pad copies.
    a, b, f = make((1, 3, 7, 5))
    out = jax.block_until_ready(l_intensity_loss(a, b, f))
    check(out, _fused_reference(a, b, f))

    print("KERNEL_OK")
</pallas_src>

<mosaic_0001>
module attributes {stable_mosaic.version = 11 : i64} {
  func.func @_l_intensity_kernel(%arg0: i32, %arg1: i32, %arg2: memref<16x128xf32, #tpu.memory_space<vmem>>, %arg3: memref<16x128xf32, #tpu.memory_space<vmem>>, %arg4: memref<16x128xf32, #tpu.memory_space<vmem>>, %arg5: memref<1x8x128xf32, #tpu.memory_space<vmem>>, %arg6: memref<8x128xf32, #tpu.memory_space<vmem>>) attributes {dimension_semantics = [#tpu.dimension_semantics<parallel>, #tpu.dimension_semantics<arbitrary>], iteration_bounds = array<i64: 1, 1>, scalar_prefetch = 0 : i64, scratch_operands = 1 : i64, tpu.core_type = #tpu.core_type<tc>, window_params = [{transform_indices = @transform_0, window_bounds = array<i64: 16, 128>}, {transform_indices = @transform_1, window_bounds = array<i64: 16, 128>}, {transform_indices = @transform_2, window_bounds = array<i64: 16, 128>}, {transform_indices = @transform_3, window_bounds = array<i64: 1, 8, 128>}]} {
    %c0_i32 = arith.constant 0 : i32
    %0 = arith.cmpi eq, %arg1, %c0_i32 : i32
    %1 = arith.extui %0 : i1 to i32
    %c0_i32_0 = arith.constant 0 : i32
    %2 = arith.cmpi ne, %1, %c0_i32_0 : i32
    scf.if %2 {
      %cst = arith.constant 0.000000e+00 : f32
      %22 = vector.broadcast %cst : f32 to vector<8x128xf32>
      %c0_13 = arith.constant 0 : index
      %c0_14 = arith.constant 0 : index
      %23 = vector.load %arg6[%c0_13, %c0_14] : memref<8x128xf32, #tpu.memory_space<vmem>>, vector<8x128xf32>
      tpu.vector_store %arg6[%c0_13, %c0_14], %22 {strides = array<i32>} : memref<8x128xf32, #tpu.memory_space<vmem>>, vector<8x128xf32>,
    } else {
    }
    %c0 = arith.constant 0 : index
    %c0_1 = arith.constant 0 : index
    %3 = vector.load %arg4[%c0, %c0_1] : memref<16x128xf32, #tpu.memory_space<vmem>>, vector<16x128xf32>
    %c0_2 = arith.constant 0 : index
    %c0_3 = arith.constant 0 : index
    %4 = vector.load %arg2[%c0_2, %c0_3] : memref<16x128xf32, #tpu.memory_space<vmem>>, vector<16x128xf32>
    %c0_4 = arith.constant 0 : index
    %c0_5 = arith.constant 0 : index
    %5 = vector.load %arg3[%c0_4, %c0_5] : memref<16x128xf32, #tpu.memory_space<vmem>>, vector<16x128xf32>
    %6 = arith.maximumf %4, %5 : vector<16x128xf32>
    %7 = arith.subf %3, %6 : vector<16x128xf32>
    %8 = math.absf %7 : vector<16x128xf32>
    %c1_i32 = arith.constant 1 : i32
    %9 = arith.muli %arg0, %c1_i32 : i32
    %10 = arith.addi %9, %arg1 : i32
    %c16_i32 = arith.constant 16 : i32
    %11 = arith.muli %10, %c16_i32 : i32
    %c16_i32_6 = arith.constant 16 : i32
    %12 = arith.subi %c16_i32_6, %11 : i32
    %c16_i32_7 = arith.constant 16 : i32
    %13 = arith.cmpi sge, %12, %c16_i32_7 : i32
    %14 = arith.extui %13 : i1 to i32
    %c0_i32_8 = arith.constant 0 : i32
    %15 = arith.cmpi ne, %14, %c0_i32_8 : i32
    scf.if %15 {
      %22 = vector.shape_cast %8 : vector<16x128xf32> to vector<2x8x128xf32>
      %c0_13 = arith.constant 0 : index
      %c0_14 = arith.constant 0 : index
      %23 = vector.load %arg6[%c0_13, %c0_14] : memref<8x128xf32, #tpu.memory_space<vmem>>, vector<8x128xf32>
      %cst = arith.constant dense<0.000000e+00> : vector<8x128xf32>
      %24 = vector.multi_reduction <add>, %22, %cst [0] : vector<2x8x128xf32> to vector<8x128xf32>
      %25 = arith.addf %23, %24 : vector<8x128xf32>
      %c0_15 = arith.constant 0 : index
      %c0_16 = arith.constant 0 : index
      %26 = vector.load %arg6[%c0_15, %c0_16] : memref<8x128xf32, #tpu.memory_space<vmem>>, vector<8x128xf32>
      tpu.vector_store %arg6[%c0_15, %c0_16], %25 {strides = array<i32>} : memref<8x128xf32, #tpu.memory_space<vmem>>, vector<8x128xf32>,
    } else {
    }
    %c16_i32_9 = arith.constant 16 : i32
    %16 = arith.cmpi slt, %12, %c16_i32_9 : i32
    %17 = arith.extui %16 : i1 to i32
    %c0_i32_10 = arith.constant 0 : i32
    %18 = arith.cmpi ne, %17, %c0_i32_10 : i32
    scf.if %18 {
      %22 = tpu.iota {dimensions = array<i32: 0>} : vector<16x128xi32>
      %23 = vector.broadcast %12 : i32 to vector<16x128xi32>
      %24 = arith.cmpi slt, %22, %23 : vector<16x128xi32>
      %cst = arith.constant 0.000000e+00 : f32
      %25 = vector.broadcast %cst : f32 to vector<16x128xf32>
      %26 = arith.select %24, %8, %25 : vector<16x128xi1>, vector<16x128xf32>
      %27 = vector.shape_cast %26 : vector<16x128xf32> to vector<2x8x128xf32>
      %c0_13 = arith.constant 0 : index
      %c0_14 = arith.constant 0 : index
      %28 = vector.load %arg6[%c0_13, %c0_14] : memref<8x128xf32, #tpu.memory_space<vmem>>, vector<8x128xf32>
      %cst_15 = arith.constant dense<0.000000e+00> : vector<8x128xf32>
      %29 = vector.multi_reduction <add>, %27, %cst_15 [0] : vector<2x8x128xf32> to vector<8x128xf32>
      %30 = arith.addf %28, %29 : vector<8x128xf32>
      %c0_16 = arith.constant 0 : index
      %c0_17 = arith.constant 0 : index
      %31 = vector.load %arg6[%c0_16, %c0_17] : memref<8x128xf32, #tpu.memory_space<vmem>>, vector<8x128xf32>
      tpu.vector_store %arg6[%c0_16, %c0_17], %30 {strides = array<i32>} : memref<8x128xf32, #tpu.memory_space<vmem>>, vector<8x128xf32>,
    } else {
    }
    %c0_i32_11 = arith.constant 0 : i32
    %19 = arith.cmpi eq, %arg1, %c0_i32_11 : i32
    %20 = arith.extui %19 : i1 to i32
    %c0_i32_12 = arith.constant 0 : i32
    %21 = arith.cmpi ne, %20, %c0_i32_12 : i32
    scf.if %21 {
      %c0_13 = arith.constant 0 : index
      %c0_14 = arith.constant 0 : index
      %22 = vector.load %arg6[%c0_13, %c0_14] : memref<8x128xf32, #tpu.memory_space<vmem>>, vector<8x128xf32>
      %c0_15 = arith.constant 0 : index
      %c0_16 = arith.constant 0 : index
      %c0_17 = arith.constant 0 : index
      %23 = vector.load %arg5[%c0_15, %c0_16, %c0_17] : memref<1x8x128xf32, #tpu.memory_space<vmem>>, vector<1x8x128xf32>
      %24 = vector.shape_cast %23 : vector<1x8x128xf32> to vector<8x128xf32>
      %25 = vector.shape_cast %22 : vector<8x128xf32> to vector<1x8x128xf32>
      tpu.vector_store %arg5[%c0_15, %c0_16, %c0_17], %25 {strides = array<i32>} : memref<1x8x128xf32, #tpu.memory_space<vmem>>, vector<1x8x128xf32>,
    } else {
    }
    return
  }
  func.func @transform_0(%arg0: i32, %arg1: i32) -> (i32, i32) {
    %c1_i32 = arith.constant 1 : i32
    %0 = arith.muli %arg0, %c1_i32 : i32
    %1 = arith.addi %0, %arg1 : i32
    %c0_i32 = arith.constant 0 : i32
    %2 = arith.minsi %1, %c0_i32 : i32
    %c0_i32_0 = arith.constant 0 : i32
    %c0_i32_1 = arith.constant 0 : i32
    return %2, %c0_i32_0 : i32, i32
  }
  func.func @transform_1(%arg0: i32, %arg1: i32) -> (i32, i32) {
    %c1_i32 = arith.constant 1 : i32
    %0 = arith.muli %arg0, %c1_i32 : i32
    %1 = arith.addi %0, %arg1 : i32
    %c0_i32 = arith.constant 0 : i32
    %2 = arith.minsi %1, %c0_i32 : i32
    %c0_i32_0 = arith.constant 0 : i32
    %c0_i32_1 = arith.constant 0 : i32
    return %2, %c0_i32_0 : i32, i32
  }
  func.func @transform_2(%arg0: i32, %arg1: i32) -> (i32, i32) {
    %c1_i32 = arith.constant 1 : i32
    %0 = arith.muli %arg0, %c1_i32 : i32
    %1 = arith.addi %0, %arg1 : i32
    %c0_i32 = arith.constant 0 : i32
    %2 = arith.minsi %1, %c0_i32 : i32
    %c0_i32_0 = arith.constant 0 : i32
    %c0_i32_1 = arith.constant 0 : i32
    return %2, %c0_i32_0 : i32, i32
  }
  func.func @transform_3(%arg0: i32, %arg1: i32) -> (i32, i32, i32) {
    %c0_i32 = arith.constant 0 : i32
    %c0_i32_0 = arith.constant 0 : i32
    %c0_i32_1 = arith.constant 0 : i32
    return %arg0, %c0_i32, %c0_i32_0 : i32, i32, i32
  }
}

</mosaic_0001>

<llo_original>
// kernel: tpu_custom_call.1
$region0: #{tpu_custom_call.1}
  #allocation0 [shape = 'u32[]', space=smem, size = 0x4, offset = 0x4, fixed_abs, tag = 'smem constant byte address 0x4 - core index']
  #allocation1 [shape = 'u32[144,128]{1,0:T(1,128)}', space=vmem, size = 0x12000, scoped, tag = 'internal scratch']
  #allocation2 [shape = 'f32[8,128]{1,0:T(8,128)}', space=vmem, size = 0x1000, scoped, tag = 'scratch operand']
  %s0 = inlined_call_operand.hbm [shape: f32[16,128], index: 0, kind: input, shape index: {}]
  %s1 = inlined_call_operand.hbm [shape: f32[16,128], index: 1, kind: input, shape index: {}]
  %s2 = inlined_call_operand.hbm [shape: f32[16,128], index: 2, kind: input, shape index: {}]
  %s3 = inlined_call_operand.hbm [shape: f32[1,8,128], index: 3, kind: output, shape index: {}]
  %s4 = sld [smem:[#allocation0]]
  $region50: #{tpu_custom_call.1} parent=0
    _
  %s6 = ssub.s32 1, %s4
  %s7 = scalar_select 0, %s6, %s4
  $region1: #{tpu_custom_call.1} parent=0
    #allocation3 [shape = 'u8[8192]{0}', space=vmem, size = 0x2000, scoped, tag = 'input window, operand 0, single buffered']
    #allocation4 [shape = 's32[1]{0}', space=sflag, size = 0x4, scoped, tag = 'scoped memory for tpu_custom_call.1']
    #allocation5 [shape = 's32[1]{0}', space=sflag, size = 0x4, scoped, tag = 'scoped memory for tpu_custom_call.1']
    #allocation6 [shape = 'u8[8192]{0}', space=vmem, size = 0x2000, scoped, tag = 'input window, operand 1, single buffered']
    #allocation7 [shape = 's32[1]{0}', space=sflag, size = 0x4, scoped, tag = 'scoped memory for tpu_custom_call.1']
    #allocation8 [shape = 'u8[8192]{0}', space=vmem, size = 0x2000, scoped, tag = 'input window, operand 2, single buffered']
    #allocation9 [shape = 'u8[4096]{0}', space=vmem, size = 0x1000, scoped, tag = 'output window, operand 0, single buffered']
    %8 = vsyncpa [#allocation4], 0
    %9 = vsyncpa [#allocation7], 0
    %10 = vsyncpa [#allocation5], 0
    // Predicated region
    $region2: #{tpu_custom_call.1} parent=1 // pred_check
      _
    $region3: #{tpu_custom_call.1} parent=1 // pred_check_branch
      %12 = sbr.rel (0) target = $region5
    $region4: #{tpu_custom_call.1} parent=1 // pred_region
      %s13 = sadd.s32 0, 0
      %p14 = scmp.lt.s32.totalorder %s13, 0
      %s15 = scalar_select %p14, %s13, 0
      %s16 = smul.u32 2, %s15
      %s18 = ssub.s32 256, 256
      %19 = vsyncadd [#allocation4], %s18
      %s20 = smul.addr %s16, 128
      %s21 = scalar_lea.hbm %s0, %s20
      %s22 = sshll.u32 [#allocation3], 4
      %s23 = int_to_ptr.vmem [resolvable:$true] %s22
      %28 = dma.hbm_to_vmem [thread:$0]  %s21, 256, %s23, [#allocation4], 128, 128, 8
    $region5: #{tpu_custom_call.1} parent=1 // pred_fallthru
      _
    // Predicated region
    $region6: #{tpu_custom_call.1} parent=1 // pred_check
      _
    $region7: #{tpu_custom_call.1} parent=1 // pred_check_branch
      %30 = sbr.rel (0) target = $region9
    $region8: #{tpu_custom_call.1} parent=1 // pred_region
      %s31 = sadd.s32 0, 0
      %p32 = scmp.lt.s32.totalorder %s31, 0
      %s33 = scalar_select %p32, %s31, 0
      %s34 = smul.u32 2, %s33
      %s36 = ssub.s32 256, 256
      %37 = vsyncadd [#allocation7], %s36
      %s38 = smul.addr %s34, 128
      %s39 = scalar_lea.hbm %s1, %s38
      %s40 = sshll.u32 [#allocation6], 4
      %s41 = int_to_ptr.vmem [resolvable:$true] %s40
      %46 = dma.hbm_to_vmem [thread:$0]  %s39, 256, %s41, [#allocation7], 128, 128, 8
    $region9: #{tpu_custom_call.1} parent=1 // pred_fallthru
      _
    // Predicated region
    $region10: #{tpu_custom_call.1} parent=1 // pred_check
      _
    $region11: #{tpu_custom_call.1} parent=1 // pred_check_branch
      %48 = sbr.rel (0) target = $region13
    $region12: #{tpu_custom_call.1} parent=1 // pred_region
      %s49 = sadd.s32 0, 0
      %p50 = scmp.lt.s32.totalorder %s49, 0
      %s51 = scalar_select %p50, %s49, 0
      %s52 = smul.u32 2, %s51
      %s54 = ssub.s32 256, 256
      %55 = vsyncadd [#allocation7], %s54
      %s56 = smul.addr %s52, 128
      %s57 = scalar_lea.hbm %s2, %s56
      %s58 = sshll.u32 [#allocation8], 4
      %s59 = int_to_ptr.vmem [resolvable:$true] %s58
      %64 = dma.hbm_to_vmem [thread:$0]  %s57, 256, %s59, [#allocation7], 128, 128, 8
    $region13: #{tpu_custom_call.1} parent=1 // pred_fallthru
      _
    // Predicated region
    $region14: #{tpu_custom_call.1} parent=1 // pred_check
      _
    $region15: #{tpu_custom_call.1} parent=1 // pred_check_branch
      %66 = sbr.rel (0) target = $region17
    $region16: #{tpu_custom_call.1} parent=1 // pred_region
      %67 = dma.done [#allocation4], 256
    $region17: #{tpu_custom_call.1} parent=1 // pred_fallthru
      _
    // Predicated region
    $region18: #{tpu_custom_call.1} parent=1 // pred_check
      _
    $region19: #{tpu_custom_call.1} parent=1 // pred_check_branch
      %69 = sbr.rel (0) target = $region21
    $region20: #{tpu_custom_call.1} parent=1 // pred_region
      %70 = dma.done [#allocation7], 256
    $region21: #{tpu_custom_call.1} parent=1 // pred_fallthru
      _
    // Predicated region
    $region22: #{tpu_custom_call.1} parent=1 // pred_check
      _
    $region23: #{tpu_custom_call.1} parent=1 // pred_check_branch
      %72 = sbr.rel (0) target = $region25
    $region24: #{tpu_custom_call.1} parent=1 // pred_region
      %73 = dma.done [#allocation7], 256
    $region25: #{tpu_custom_call.1} parent=1 // pred_fallthru
      _
    %s74 = sadd.s32 0, 0
    %p75 = scmp.lt.s32.totalorder %s74, 0
    %s76 = scalar_select %p75, %s74, 0
    %s77 = smul.u32 2, %s76
    %s78 = sadd.s32 0, 0
    %p79 = scmp.lt.s32.totalorder %s78, 0
    %s80 = scalar_select %p79, %s78, 0
    %s81 = smul.u32 2, %s80
    %s82 = sadd.s32 0, 0
    %p83 = scmp.lt.s32.totalorder %s82, 0
    %s84 = scalar_select %p83, %s82, 0
    %s85 = smul.u32 2, %s84
    %p86 = scmp.eq.s32.totalorder 0, 0
    // Predicated region
    $region26: #{tpu_custom_call.1} parent=1 // pred_check
      %p87 = pneg %p86
    $region27: #{tpu_custom_call.1} parent=1 // pred_check_branch
      %89 = sbr.rel (%p87) target = $region29
    $region28: #{tpu_custom_call.1} parent=1 // pred_region
      %90 = vst [vmem:[#allocation2] sm:$0xff] 0.0
    $region29: #{tpu_custom_call.1} parent=1 // pred_fallthru
      _
    %v91 = vld [vmem:[#allocation8] sm:$0xff]
    %v92 = vld [vmem:[#allocation8 + $0x8] sm:$0xff]
    %v93 = vld [vmem:[#allocation3] sm:$0xff]
    %v94 = vld [vmem:[#allocation3 + $0x8] sm:$0xff]
    %v95 = vld [vmem:[#allocation6] sm:$0xff]
    %v96 = vld [vmem:[#allocation6 + $0x8] sm:$0xff]
    %v97 = vmax.f32 %v93, %v95
    %v98 = vmax.f32 %v94, %v96
    %v99 = vsub.f32 %v91, %v97
    %v100 = vsub.f32 %v92, %v98
    %v101 = vand.u32 2147483647, %v99
    %v102 = vand.u32 2147483647, %v100
    %s103 = sadd.s32 0, 0
    %s104 = smul.u32 %s103, 16
    %s105 = ssub.s32 16, %s104
    %p106 = scmp.ge.s32.totalorder %s105, 16
    // Predicated region
    $region30: #{tpu_custom_call.1} parent=1 // pred_check
      %p107 = pneg %p106
    $region31: #{tpu_custom_call.1} parent=1 // pred_check_branch
      %109 = sbr.rel (%p107) target = $region33
    $region32: #{tpu_custom_call.1} parent=1 // pred_region
      %v110 = vld [vmem:[#allocation2] sm:$0xff]
      %v111 = vadd.f32 %v101, %v102
      %v112 = vadd.f32 %v110, %v111
      %113 = vst [vmem:[#allocation2] sm:$0xff] %v112
    $region33: #{tpu_custom_call.1} parent=1 // pred_fallthru
      _
    %p114 = scmp.lt.s32.totalorder %s105, 16
    // Predicated region
    $region34: #{tpu_custom_call.1} parent=1 // pred_check
      %p115 = pneg %p114
    $region35: #{tpu_custom_call.1} parent=1 // pred_check_branch
      %117 = sbr.rel (%p115) target = $region37
    $region36: #{tpu_custom_call.1} parent=1 // pred_region
      %v118 = vlaneseq
      %v119 = vshrl.u32 %v118, 7
      %v120 = vadd.s32 %v119, 8
      %v121 = vstv %s105
      %vm122 = vcmp.lt.s32.totalorder %v119, %v121
      %vm123 = vcmp.lt.s32.totalorder %v120, %v121
      %v124 = vsel %vm122, %v101, 0.0
      %v125 = vsel %vm123, %v102, 0.0
      %v126 = vld [vmem:[#allocation2] sm:$0xff]
      %v127 = vadd.f32 %v124, %v125
      %v128 = vadd.f32 %v126, %v127
      %129 = vst [vmem:[#allocation2] sm:$0xff] %v128
    $region37: #{tpu_custom_call.1} parent=1 // pred_fallthru
      _
    // Predicated region
    $region38: #{tpu_custom_call.1} parent=1 // pred_check
      %p130 = pneg %p86
    $region39: #{tpu_custom_call.1} parent=1 // pred_check_branch
      %132 = sbr.rel (%p130) target = $region41
    $region40: #{tpu_custom_call.1} parent=1 // pred_region
      %v133 = vld [vmem:[#allocation2] sm:$0xff]
      %134 = vst [vmem:[#allocation9] sm:$0xff] %v133
    $region41: #{tpu_custom_call.1} parent=1 // pred_fallthru
      _
    // Predicated region
    $region42: #{tpu_custom_call.1} parent=1 // pred_check
      _
    $region43: #{tpu_custom_call.1} parent=1 // pred_check_branch
      %136 = sbr.rel (0) target = $region45
    $region44: #{tpu_custom_call.1} parent=1 // pred_region
      %s138 = ssub.s32 128, 128
      %139 = vsyncadd [#allocation5], %s138
      %s141 = sshll.u32 [#allocation9], 4
      %s142 = int_to_ptr.vmem [resolvable:$true] %s141
      %144 = dma.vmem_to_hbm [thread:$0]  %s142, 128, %s3, [#allocation5]
    $region45: #{tpu_custom_call.1} parent=1 // pred_fallthru
      _
    // Predicated region
    $region46: #{tpu_custom_call.1} parent=1 // pred_check
      _
    $region47: #{tpu_custom_call.1} parent=1 // pred_check_branch
      %146 = sbr.rel (0) target = $region49
    $region48: #{tpu_custom_call.1} parent=1 // pred_region
      %147 = dma.done [#allocation5], 128
    $region49: #{tpu_custom_call.1} parent=1 // pred_fallthru
      _
    %148 = vsyncpa [#allocation4], 1
    %149 = vsyncpa [#allocation7], 1
    %150 = vsyncpa [#allocation5], 1

</llo_original>
